<compile_context>
chip_gen: v6e
topology: v6e:2x2x1
jax: 0.10.0
libtpu: 0.0.40
codegen_flags: <defaults>
</compile_context>

<pallas_src>
from functools import partial

import jax
import jax.numpy as jnp
from jax.experimental import pallas as pl
from jax.experimental.pallas import tpu as pltpu

T_DIM = 3 + 3 + 3          # 9, as in the module
C_DIM = 128                # cfg.GAN.CONDITION_DIM (synthetic choice)

# Per-generation defaults: max batch-tile rows and whether the grid should be
# split for megacore (2 TensorCores per chip only on v7x).
_GEN_TB_MAX = {"v5": 4096, "v6": 8192, "v7": 16384, "unknown": 4096}
_GEN_MIN_STEPS = {"v5": 1, "v6": 1, "v7": 2, "unknown": 1}


def _round_up(n, m):
    return ((n + m - 1) // m) * m


def _tpu_generation():
    try:
        kind = jax.devices()[0].device_kind.lower()
    except Exception:
        return "unknown"
    if "v5" in kind:
        return "v5"
    if "v6" in kind:
        return "v6"
    if "v7" in kind or "7x" in kind or "tpu7" in kind:
        return "v7"
    return "unknown"


def cond_net_kernel(alpha_ref, x_ref, w_ref, b_ref, o_ref, *, mxu_dtype, precision):
    # Linear: y = x @ W^T + b   (W stored transposed as (T_DIM, C_DIM)).
    x = x_ref[...]
    w = w_ref[...]
    if mxu_dtype is not None:
        # Cuts f32 multi-pass MXU emulation (v7x micro-opt); K=9 so accuracy
        # impact is negligible.  Accumulation stays f32.
        x = x.astype(mxu_dtype)
        w = w.astype(mxu_dtype)
    y = jnp.dot(x, w, preferred_element_type=jnp.float32, precision=precision)
    y = y + b_ref[...]                      # (TB, C) + (1, C) broadcast
    # PReLU with a single learned scalar slope (nn.PReLU() default), from SMEM.
    a = alpha_ref[0]
    o_ref[...] = jnp.where(y > 0, y, a * y).astype(o_ref.dtype)


def cond_net_forward(full_embed, w_t, bias, alpha, *,
                     out_dtype=jnp.float32, tb_max=None, min_steps=None,
                     mxu_dtype=None, precision=None):
    """full_embed: (B, T_DIM) f32; w_t: (T_DIM, C_DIM); bias: (C_DIM,); alpha: scalar."""
    B, t_dim = full_embed.shape
    c_dim = w_t.shape[1]

    gen = _tpu_generation()
    if tb_max is None:
        tb_max = _GEN_TB_MAX[gen]
    if min_steps is None:
        min_steps = _GEN_MIN_STEPS[gen]

    # Batch tile: multiple of 8 (sublane constraint); split into >= min_steps
    # grid steps so both v7x TensorCores get work via the "parallel" axis.
    rows_per_step = -(-B // max(1, min_steps))
    TB = max(8, min(tb_max, _round_up(rows_per_step, 8)))
    grid = (pl.cdiv(B, TB),)                # partial tail block handled by Pallas

    out_bytes = jnp.dtype(out_dtype).itemsize
    # Double-buffered VMEM footprint per step: the (TB, t_dim) x block lane-pads
    # to 128 lanes (512 B/row f32) + the (TB, C) output block.
    vmem_needed = 2 * TB * (128 * 4 + c_dim * out_bytes) + (1 << 20)
    vmem_limit = None
    if vmem_needed > (24 << 20):            # only the large v7x tile needs a raise
        vmem_limit = min(48 << 20, vmem_needed + (8 << 20))

    bias2d = bias.reshape(1, c_dim)
    alpha1d = jnp.reshape(alpha, (1,)).astype(jnp.float32)

    cost = pl.CostEstimate(
        flops=2 * B * t_dim * c_dim,
        transcendentals=0,
        bytes_accessed=B * (t_dim * 4 + c_dim * out_bytes)
                       + t_dim * c_dim * 4 + c_dim * 4,
    )

    kernel = partial(cond_net_kernel, mxu_dtype=mxu_dtype, precision=precision)

    return pl.pallas_call(
        kernel,
        out_shape=jax.ShapeDtypeStruct((B, c_dim), out_dtype),
        grid=grid,
        in_specs=[
            pl.BlockSpec(memory_space=pltpu.SMEM),                 # alpha (1,) scalar
            pl.BlockSpec((TB, t_dim), lambda i: (i, 0)),           # x: row-tiled
            pl.BlockSpec((t_dim, c_dim), lambda i: (0, 0)),        # W^T: VMEM-resident
            pl.BlockSpec((1, c_dim), lambda i: (0, 0)),            # bias: VMEM-resident
        ],
        out_specs=pl.BlockSpec((TB, c_dim), lambda i: (i, 0)),     # out: row-tiled, lane-dense
        compiler_params=pltpu.CompilerParams(
            dimension_semantics=("parallel",),                     # megacore on v7x
            vmem_limit_bytes=vmem_limit,
        ),
        cost_estimate=cost,
    )(alpha1d, full_embed, w_t, bias2d)


def reference_forward(full_embed, w_t, bias, alpha):
    y = full_embed @ w_t + bias[None, :]
    return jnp.where(y > 0, y, alpha * y)


if __name__ == "__main__":
    key = jax.random.PRNGKey(0)
    k_x, k_w, k_b, k_x2, k_x3 = jax.random.split(key, 5)

    # Deterministic synthetic parameters (shapes match nn.Linear(9, C_DIM) + PReLU()).
    bound = 1.0 / (T_DIM ** 0.5)
    w = jax.random.uniform(k_w, (C_DIM, T_DIM), jnp.float32, -bound, bound)  # PyTorch (out, in)
    b = jax.random.uniform(k_b, (C_DIM,), jnp.float32, -bound, bound)
    alpha = jnp.float32(0.25)                                                # nn.PReLU() default
    w_t = w.T                                                                # (T_DIM, C_DIM)

    # Case 1: small batch, default (f32, exact module semantics), single grid step.
    B = 8
    full_embed = jax.random.normal(k_x, (B, T_DIM), jnp.float32)
    out = jax.block_until_ready(cond_net_forward(full_embed, w_t, b, alpha))
    ref = reference_forward(full_embed, w_t, b, alpha)
    assert out.shape == (B, C_DIM)
    assert jnp.allclose(out, ref, atol=1e-5, rtol=1e-5), "mismatch vs reference (B=8)"

    # Case 2: exercise the batch grid with a partial tail tile (B=20, TB=8 -> 3 steps).
    B2 = 20
    full_embed2 = jax.random.normal(k_x2, (B2, T_DIM), jnp.float32)
    out2 = jax.block_until_ready(
        cond_net_forward(full_embed2, w_t, b, alpha, tb_max=8, min_steps=1))
    ref2 = reference_forward(full_embed2, w_t, b, alpha)
    assert out2.shape == (B2, C_DIM)
    assert jnp.allclose(out2, ref2, atol=1e-5, rtol=1e-5), "mismatch vs reference (tiled)"

    # Case 3: bandwidth-optimized path (bf16 output + bf16 MXU inputs, 2 grid steps).
    B3 = 64
    full_embed3 = jax.random.normal(k_x3, (B3, T_DIM), jnp.float32)
    out3 = jax.block_until_ready(
        cond_net_forward(full_embed3, w_t, b, alpha,
                         out_dtype=jnp.bfloat16, mxu_dtype=jnp.bfloat16,
                         tb_max=32, min_steps=2))
    ref3 = reference_forward(full_embed3, w_t, b, alpha)
    assert out3.shape == (B3, C_DIM)
    assert jnp.allclose(out3.astype(jnp.float32), ref3, atol=2e-2, rtol=2e-2), \
        "mismatch vs reference (bf16 fast path)"

    print("KERNEL_OK")
</pallas_src>

<mosaic_0001>
module attributes {stable_mosaic.version = 11 : i64} {
  func.func @cond_net_kernel(%arg0: i32, %arg1: memref<1xf32, #tpu.memory_space<smem>>, %arg2: memref<8x9xf32, #tpu.memory_space<vmem>>, %arg3: memref<9x128xf32, #tpu.memory_space<vmem>>, %arg4: memref<1x128xf32, #tpu.memory_space<vmem>>, %arg5: memref<8x128xf32, #tpu.memory_space<vmem>>) attributes {dimension_semantics = [#tpu.dimension_semantics<parallel>], iteration_bounds = array<i64: 1>, scalar_prefetch = 0 : i64, scratch_operands = 0 : i64, tpu.core_type = #tpu.core_type<tc>, window_params = [{transform_indices = @transform_0, window_bounds = array<i64: 1>}, {transform_indices = @transform_1, window_bounds = array<i64: 8, 9>}, {pipeline_mode = #tpu.pipeline_mode<synchronous>, transform_indices = @transform_2, window_bounds = array<i64: 9, 128>}, {pipeline_mode = #tpu.pipeline_mode<synchronous>, transform_indices = @transform_3, window_bounds = array<i64: 1, 128>}, {transform_indices = @transform_4, window_bounds = array<i64: 8, 128>}]} {
    %c0 = arith.constant 0 : index
    %c0_0 = arith.constant 0 : index
    %0 = vector.load %arg2[%c0, %c0_0] : memref<8x9xf32, #tpu.memory_space<vmem>>, vector<8x9xf32>
    %c0_1 = arith.constant 0 : index
    %c0_2 = arith.constant 0 : index
    %1 = vector.load %arg3[%c0_1, %c0_2] : memref<9x128xf32, #tpu.memory_space<vmem>>, vector<9x128xf32>
    %cst = arith.constant dense<0.000000e+00> : vector<8x128xf32>
    %2 = tpu.matmul %0, %1, %cst {dimension_numbers = #tpu.dot_dimension_numbers<[1], [0], [0], [1], [0, 0, 1, 1], [], []>} : vector<8x9xf32>, vector<9x128xf32>, vector<8x128xf32> -> vector<8x128xf32>
    %c0_3 = arith.constant 0 : index
    %c0_4 = arith.constant 0 : index
    %3 = vector.load %arg4[%c0_3, %c0_4] : memref<1x128xf32, #tpu.memory_space<vmem>>, vector<1x128xf32>
    %4 = vector.broadcast %3 : vector<1x128xf32> to vector<8x128xf32>
    %5 = arith.addf %2, %4 : vector<8x128xf32>
    %c0_5 = arith.constant 0 : index
    %6 = memref.load %arg1[%c0_5] : memref<1xf32, #tpu.memory_space<smem>>
    %cst_6 = arith.constant 0.000000e+00 : f32
    %7 = vector.broadcast %cst_6 : f32 to vector<8x128xf32>
    %8 = arith.cmpf ogt, %5, %7 : vector<8x128xf32>
    %9 = vector.broadcast %6 : f32 to vector<8x128xf32>
    %10 = arith.mulf %9, %5 : vector<8x128xf32>
    %11 = arith.select %8, %5, %10 : vector<8x128xi1>, vector<8x128xf32>
    %c0_7 = arith.constant 0 : index
    %c0_8 = arith.constant 0 : index
    %12 = vector.load %arg5[%c0_7, %c0_8] : memref<8x128xf32, #tpu.memory_space<vmem>>, vector<8x128xf32>
    tpu.vector_store %arg5[%c0_7, %c0_8], %11 {strides = array<i32>} : memref<8x128xf32, #tpu.memory_space<vmem>>, vector<8x128xf32>,
    return
  }
  func.func @transform_0(%arg0: i32) -> i32 {
    %c0_i32 = arith.constant 0 : i32
    %c0_i32_0 = arith.constant 0 : i32
    return %c0_i32 : i32
  }
  func.func @transform_1(%arg0: i32) -> (i32, i32) {
    %c0_i32 = arith.constant 0 : i32
    %c0_i32_0 = arith.constant 0 : i32
    return %arg0, %c0_i32 : i32, i32
  }
  func.func @transform_2(%arg0: i32) -> (i32, i32) {
    %c0_i32 = arith.constant 0 : i32
    %c0_i32_0 = arith.constant 0 : i32
    %c0_i32_1 = arith.constant 0 : i32
    return %c0_i32, %c0_i32_0 : i32, i32
  }
  func.func @transform_3(%arg0: i32) -> (i32, i32) {
    %c0_i32 = arith.constant 0 : i32
    %c0_i32_0 = arith.constant 0 : i32
    %c0_i32_1 = arith.constant 0 : i32
    return %c0_i32, %c0_i32_0 : i32, i32
  }
  func.func @transform_4(%arg0: i32) -> (i32, i32) {
    %c0_i32 = arith.constant 0 : i32
    %c0_i32_0 = arith.constant 0 : i32
    return %arg0, %c0_i32 : i32, i32
  }
}

</mosaic_0001>

<llo_original>
// kernel: tpu_custom_call.1
$region0: #{tpu_custom_call.1}
  #allocation0 [shape = 'u32[]', space=smem, size = 0x4, offset = 0x4, fixed_abs, tag = 'smem constant byte address 0x4 - core index']
  #allocation1 [shape = 'u32[144,128]{1,0:T(1,128)}', space=vmem, size = 0x12000, scoped, tag = 'internal scratch']
  #allocation2 [shape = 'f32[1]{0:T(128)S(6)}', space=smem, size = 0x200, scoped, tag = 'scoped memory for tpu_custom_call.1']
  %s0 = inlined_call_operand.<no memory space> [shape: f32[1], index: 0, kind: input, shape index: {}]
  %s1 = inlined_call_operand.hbm [shape: f32[8,9], index: 1, kind: input, shape index: {}]
  %s2 = inlined_call_operand.hbm [shape: f32[9,128], index: 2, kind: input, shape index: {}]
  %s3 = inlined_call_operand.vmem [shape: f32[1,128], index: 3, kind: input, shape index: {}]
  %s4 = inlined_call_operand.hbm [shape: f32[8,128], index: 4, kind: output, shape index: {}]
  %s5 = sld [smem:[#allocation0]]
  $region34: #{tpu_custom_call.1} parent=0
    _
  %s7 = ssub.s32 1, %s5
  %s8 = scalar_select 0, %s7, %s5
  %9 = sst [smem:[#allocation2]] %s0
  $region1: #{tpu_custom_call.1} parent=0
    #allocation3 [shape = 'u8[4096]{0}', space=vmem, size = 0x1000, scoped, tag = 'input window, operand 1, single buffered']
    #allocation4 [shape = 's32[1]{0}', space=sflag, size = 0x4, scoped, tag = 'scoped memory for tpu_custom_call.1']
    #allocation5 [shape = 's32[1]{0}', space=sflag, size = 0x4, scoped, tag = 'scoped memory for tpu_custom_call.1']
    #allocation6 [shape = 'u8[8192]{0}', space=vmem, size = 0x2000, scoped, tag = 'input window, operand 2, single buffered']
    #allocation7 [shape = 's32[1]{0}', space=sflag, size = 0x4, scoped, tag = 'scoped memory for tpu_custom_call.1']
    #allocation8 [shape = 'u8[4096]{0}', space=vmem, size = 0x1000, scoped, tag = 'output window, operand 0, single buffered']
    %10 = vsyncpa [#allocation4], 0
    %11 = vsyncpa [#allocation7], 0
    %12 = vsyncpa [#allocation5], 0
    // Predicated region
    $region2: #{tpu_custom_call.1} parent=1 // pred_check
      _
    $region3: #{tpu_custom_call.1} parent=1 // pred_check_branch
      %14 = sbr.rel (0) target = $region5
    $region4: #{tpu_custom_call.1} parent=1 // pred_region
      _
    $region5: #{tpu_custom_call.1} parent=1 // pred_fallthru
      _
    // Predicated region
    $region6: #{tpu_custom_call.1} parent=1 // pred_check
      _
    $region7: #{tpu_custom_call.1} parent=1 // pred_check_branch
      %16 = sbr.rel (0) target = $region9
    $region8: #{tpu_custom_call.1} parent=1 // pred_region
      %s18 = ssub.s32 128, 128
      %19 = vsyncadd [#allocation4], %s18
      %s21 = sshll.u32 [#allocation3], 4
      %s22 = int_to_ptr.vmem [resolvable:$true] %s21
      %24 = dma.hbm_to_vmem [thread:$0]  %s1, 128, %s22, [#allocation4]
    $region9: #{tpu_custom_call.1} parent=1 // pred_fallthru
      _
    // Predicated region
    $region10: #{tpu_custom_call.1} parent=1 // pred_check
      _
    $region11: #{tpu_custom_call.1} parent=1 // pred_check_branch
      %26 = sbr.rel (0) target = $region13
    $region12: #{tpu_custom_call.1} parent=1 // pred_region
      %s28 = ssub.s32 256, 256
      %29 = vsyncadd [#allocation7], %s28
      %s30 = sshll.u32 [#allocation6], 4
      %s31 = int_to_ptr.vmem [resolvable:$true] %s30
      %36 = dma.hbm_to_vmem [thread:$0]  %s2, 256, %s31, [#allocation7], 128, 128, 8
    $region13: #{tpu_custom_call.1} parent=1 // pred_fallthru
      _
    // Predicated region
    $region14: #{tpu_custom_call.1} parent=1 // pred_check
      _
    $region15: #{tpu_custom_call.1} parent=1 // pred_check_branch
      %38 = sbr.rel (0) target = $region17
    $region16: #{tpu_custom_call.1} parent=1 // pred_region
      _
    $region17: #{tpu_custom_call.1} parent=1 // pred_fallthru
      _
    // Predicated region
    $region18: #{tpu_custom_call.1} parent=1 // pred_check
      _
    $region19: #{tpu_custom_call.1} parent=1 // pred_check_branch
      %40 = sbr.rel (0) target = $region21
    $region20: #{tpu_custom_call.1} parent=1 // pred_region
      %41 = dma.done [#allocation4], 128
    $region21: #{tpu_custom_call.1} parent=1 // pred_fallthru
      _
    // Predicated region
    $region22: #{tpu_custom_call.1} parent=1 // pred_check
      _
    $region23: #{tpu_custom_call.1} parent=1 // pred_check_branch
      %43 = sbr.rel (0) target = $region25
    $region24: #{tpu_custom_call.1} parent=1 // pred_region
      %44 = dma.done [#allocation7], 256
    $region25: #{tpu_custom_call.1} parent=1 // pred_fallthru
      _
    %v45 = vld [vmem:[#allocation3] sm:$0xff]
    %v46 = vld [vmem:[#allocation6] sm:$0xff]
    %v47 = vld [vmem:[#allocation6 + $0x8] sm:$0x1]
    %v48 = vld [vmem:[%s3] sm:$0x1]
    %v50 = vlaneseq
    %v51 = vshrl.u32 %v50, 7
    %v52 = vsub.s32 0, %v51
    %v53 = vrot.slane %v48, %v52
    %vm55 = vcmask 72704
    %v57 = vsel %vm55, %v45, 0
    %vm59 = vcmask 1040384
    %v61 = vsel %vm59, %v47, 0
    %63 = vmatprep.subr.mxu0 0.0
    %64 = vmatpush1.msra.mxu0 0.0
    %65 = vmatprep.subr.mxu0 0.0
    %66 = vmatpush1.msra.mxu0 0.0
    %67 = vmatprep.subr.mxu0 0.0
    %68 = vmatpush1.msra.mxu0 0.0
    %69 = vmatprep.subr.mxu0 0.0
    %70 = vmatpush1.msra.mxu0 0.0
    %71 = vmatprep.subr.mxu0 0.0
    %72 = vmatpush1.msra.mxu0 0.0
    %73 = vmatprep.subr.mxu0 0.0
    %74 = vmatpush1.msra.mxu0 0.0
    %75 = vmatprep.subr.mxu0 0.0
    %76 = vmatpush1.msra.mxu0 0.0
    %77 = vmatprep.subr.mxu0 0.0
    %78 = vmatpush1.msra.mxu0 0.0
    %79 = vmatprep.subr.mxu0 0.0
    %80 = vmatpush1.msra.mxu0 0.0
    %81 = vmatprep.subr.mxu0 0.0
    %82 = vmatpush1.msra.mxu0 0.0
    %83 = vmatprep.subr.mxu0 0.0
    %84 = vmatpush1.msra.mxu0 0.0
    %85 = vmatprep.subr.mxu0 0.0
    %86 = vmatpush1.msra.mxu0 0.0
    %87 = vmatprep.subr.mxu0 0.0
    %88 = vmatpush1.msra.mxu0 0.0
    %89 = vmatprep.subr.mxu0 0.0
    %90 = vmatpush1.msra.mxu0 0.0
    %91 = vmatprep.subr.mxu0 0.0
    %92 = vmatpush1.msra.mxu0 %v61
    %93 = vmatprep.subr.mxu0 0.0
    %94 = vmatpush1.msra.mxu0 %v46
    %95 = vmatprep.subr.mxu0 0.0
    %96 = vmatpush2.msra.mxu0 0.0
    %97 = vmatprep.subr.mxu0 0.0
    %98 = vmatpush2.msra.mxu0 0.0
    %99 = vmatprep.subr.mxu0 0.0
    %100 = vmatpush2.msra.mxu0 0.0
    %101 = vmatprep.subr.mxu0 0.0
    %102 = vmatpush2.msra.mxu0 0.0
    %103 = vmatprep.subr.mxu0 0.0
    %104 = vmatpush2.msra.mxu0 0.0
    %105 = vmatprep.subr.mxu0 0.0
    %106 = vmatpush2.msra.mxu0 0.0
    %107 = vmatprep.subr.mxu0 0.0
    %108 = vmatpush2.msra.mxu0 0.0
    %109 = vmatprep.subr.mxu0 0.0
    %110 = vmatpush2.msra.mxu0 0.0
    %111 = vmatprep.subr.mxu0 0.0
    %112 = vmatpush2.msra.mxu0 0.0
    %113 = vmatprep.subr.mxu0 0.0
    %114 = vmatpush2.msra.mxu0 0.0
    %115 = vmatprep.subr.mxu0 0.0
    %116 = vmatpush2.msra.mxu0 0.0
    %117 = vmatprep.subr.mxu0 0.0
    %118 = vmatpush2.msra.mxu0 0.0
    %119 = vmatprep.subr.mxu0 0.0
    %120 = vmatpush2.msra.mxu0 0.0
    %121 = vmatprep.subr.mxu0 0.0
    %122 = vmatpush2.msra.mxu0 0.0
    %123 = vmatprep.subr.mxu0 0.0
    %124 = vmatpush2.msra.mxu0 0.0
    %125 = vmatprep.subr.mxu0 0.0
    %126 = vmatpush2.msra.mxu0 0.0
    %127 = vmatprep.mubr.f32.mxu0 0.0
    %128 = vmatmul.mubr.f32.gmra.mxu0 %v57
    %v129 = vpop.f32.mrf.mxu0
    %v130 = vadd.f32 %v53, %v129
    %v131 = vpop.f32.mrf.mxu0
    %132 = vdwg.mxu0
    %s133 = sld [smem:[#allocation2]]
    %vm134 = vcmp.gt.f32.partialorder %v130, 0.0
    %v135 = vstv %s133
    %v136 = vmul.f32 %v135, %v130
    %v137 = vsel %vm134, %v130, %v136
    %138 = vst [vmem:[#allocation8] sm:$0xff] %v137
    // Predicated region
    $region26: #{tpu_custom_call.1} parent=1 // pred_check
      _
    $region27: #{tpu_custom_call.1} parent=1 // pred_check_branch
      %140 = sbr.rel (0) target = $region29
    $region28: #{tpu_custom_call.1} parent=1 // pred_region
      %s142 = ssub.s32 128, 128
      %143 = vsyncadd [#allocation5], %s142
      %s145 = sshll.u32 [#allocation8], 4
      %s146 = int_to_ptr.vmem [resolvable:$true] %s145
      %148 = dma.vmem_to_hbm [thread:$0]  %s146, 128, %s4, [#allocation5]
    $region29: #{tpu_custom_call.1} parent=1 // pred_fallthru
      _
    // Predicated region
    $region30: #{tpu_custom_call.1} parent=1 // pred_check
      _
    $region31: #{tpu_custom_call.1} parent=1 // pred_check_branch
      %150 = sbr.rel (0) target = $region33
    $region32: #{tpu_custom_call.1} parent=1 // pred_region
      %151 = dma.done [#allocation5], 128
    $region33: #{tpu_custom_call.1} parent=1 // pred_fallthru
      _
    %152 = vsyncpa [#allocation4], 1
    %153 = vsyncpa [#allocation7], 1
    %154 = vsyncpa [#allocation5], 1

</llo_original>
